<compile_context>
chip_gen: v7x
topology: tpu7x:2x2x1
jax: 0.10.0
libtpu: 0.0.40
codegen_flags: <defaults>
</compile_context>

<pallas_src>
import jax
import jax.numpy as jnp
from jax.experimental import pallas as pl
from jax.experimental.pallas import tpu as pltpu


def _round_up(x, m):
    return ((x + m - 1) // m) * m


def _choose_row_tile(n, f, c, x_itemsize, w_itemsize):
    """Row tile that (a) fits a ~24 MiB pipeline budget and (b) splits N evenly."""
    LANE = 128
    budget = 24 * 1024 * 1024
    f_lanes = _round_up(f, LANE)          # x lane footprint per row in VMEM
    c_lanes = _round_up(c, LANE)          # logits/out lane footprint per row
    # W + bias are VMEM-resident (constant index_map) but still double-buffered.
    fixed = 2 * (_round_up(f, 8) * c_lanes * w_itemsize + 8 * c_lanes * 4)
    # Double-buffered x tile + double-buffered output tile.
    per_row = 2 * (f_lanes * x_itemsize + c_lanes * 4)
    tile_max = (budget - fixed) // per_row
    tile_max = max(16, min(int(tile_max), 4096))

    num_tiles = pl.cdiv(n, tile_max)
    if num_tiles > 1 and num_tiles % 2:
        num_tiles += 1                    # v7x: even tile count across both TCs
    tile_n = _round_up(pl.cdiv(n, num_tiles), 16)
    return int(tile_n)


def sgc_kernel(x_ref, w_ref, b_ref, o_ref):
    # MXU matmul: (tile_n, F) @ (F, C) -> (tile_n, C), f32 accumulation.
    logits = jnp.dot(x_ref[...], w_ref[...], preferred_element_type=jnp.float32)
    logits = logits + b_ref[...]          # bias broadcast over rows, shape (1, C)

    # log_softmax along the class axis (dim=1 in the PyTorch module), all f32.
    m = jnp.max(logits, axis=-1, keepdims=True)
    shifted = logits - m
    lse = jnp.log(jnp.sum(jnp.exp(shifted), axis=-1, keepdims=True))
    o_ref[...] = (shifted - lse).astype(o_ref.dtype)


def sgc_forward(x, w, b):
    """x: (N, F), w: (F, C), b: (C,) -> (N, C) float32 log-probabilities.

    The matmul runs in x.dtype (pass bf16 x for halved input HBM traffic when
    the upstream precompute already produces bf16); accumulation and the
    log-softmax stay in f32.
    """
    N, F = x.shape
    C = w.shape[1]
    x_itemsize = jnp.dtype(x.dtype).itemsize

    # W and bias are tiny; cast them (not x) so the MXU sees matching dtypes.
    w = w.astype(x.dtype)
    b2 = b.astype(jnp.float32).reshape(1, C)

    tile_n = _choose_row_tile(N, F, C, x_itemsize, jnp.dtype(w.dtype).itemsize)
    grid_n = pl.cdiv(N, tile_n)

    cost = pl.CostEstimate(
        flops=2 * N * F * C,
        transcendentals=N * C,
        bytes_accessed=(N * F * x_itemsize + F * C * x_itemsize
                        + C * 4 + N * C * 4),
    )

    out = pl.pallas_call(
        sgc_kernel,
        out_shape=jax.ShapeDtypeStruct((N, C), jnp.float32),
        grid=(grid_n,),
        in_specs=[
            pl.BlockSpec((tile_n, F), lambda i: (i, 0)),  # x: tiled over rows
            pl.BlockSpec((F, C), lambda i: (0, 0)),       # W: VMEM-resident
            pl.BlockSpec((1, C), lambda i: (0, 0)),       # bias: VMEM-resident
        ],
        out_specs=pl.BlockSpec((tile_n, C), lambda i: (i, 0)),
        compiler_params=pltpu.CompilerParams(
            dimension_semantics=("parallel",),
            vmem_limit_bytes=32 * 1024 * 1024,
        ),
        cost_estimate=cost,
    )(x, w, b2)

    return out


if __name__ == "__main__":
    # Small synthetic "dataset": 64 nodes, 32 node features, 8 classes.
    num_nodes, num_features, num_classes = 64, 32, 8

    key = jax.random.PRNGKey(0)
    kx, kw, kb = jax.random.split(key, 3)

    x = jax.random.normal(kx, (num_nodes, num_features), dtype=jnp.float32)
    # Deterministic Linear params (torch.nn.Linear(num_features, num_classes)).
    w = jax.random.normal(kw, (num_features, num_classes), dtype=jnp.float32) * 0.1
    b = jax.random.normal(kb, (num_classes,), dtype=jnp.float32) * 0.1

    ref = jax.nn.log_softmax(x @ w + b, axis=1)

    # f32 path: tight correctness check.
    out_f32 = sgc_forward(x, w, b)
    jax.block_until_ready(out_f32)
    assert out_f32.shape == (num_nodes, num_classes)
    assert jnp.allclose(out_f32, ref, atol=1e-5, rtol=1e-5)

    # Ragged N (exercises the cdiv tail block: OOB rows read garbage but are
    # never written back; valid rows are unaffected since rows are independent).
    n2 = 50
    out_ragged = sgc_forward(x[:n2], w, b)
    jax.block_until_ready(out_ragged)
    assert out_ragged.shape == (n2, num_classes)
    assert jnp.allclose(out_ragged, ref[:n2], atol=1e-5, rtol=1e-5)

    # bf16 path: x is cast *upstream* (here, once, standing in for a bf16
    # precompute output); looser tolerance.
    out_bf16 = sgc_forward(x.astype(jnp.bfloat16), w, b)
    jax.block_until_ready(out_bf16)
    assert jnp.allclose(out_bf16, ref, atol=5e-2, rtol=5e-2)

    print("KERNEL_OK")
</pallas_src>

<mosaic_0001>
module attributes {stable_mosaic.version = 11 : i64} {
  func.func @sgc_kernel(%arg0: i32, %arg1: memref<64x32xf32, #tpu.memory_space<vmem>>, %arg2: memref<32x8xf32, #tpu.memory_space<vmem>>, %arg3: memref<1x8xf32, #tpu.memory_space<vmem>>, %arg4: memref<64x8xf32, #tpu.memory_space<vmem>>) attributes {dimension_semantics = [#tpu.dimension_semantics<parallel>], iteration_bounds = array<i64: 1>, scalar_prefetch = 0 : i64, scratch_operands = 0 : i64, tpu.core_type = #tpu.core_type<tc>, window_params = [{transform_indices = @transform_0, window_bounds = array<i64: 64, 32>}, {pipeline_mode = #tpu.pipeline_mode<synchronous>, transform_indices = @transform_1, window_bounds = array<i64: 32, 8>}, {pipeline_mode = #tpu.pipeline_mode<synchronous>, transform_indices = @transform_2, window_bounds = array<i64: 1, 8>}, {transform_indices = @transform_3, window_bounds = array<i64: 64, 8>}]} {
    %c0 = arith.constant 0 : index
    %c0_0 = arith.constant 0 : index
    %0 = vector.load %arg1[%c0, %c0_0] : memref<64x32xf32, #tpu.memory_space<vmem>>, vector<64x32xf32>
    %c0_1 = arith.constant 0 : index
    %c0_2 = arith.constant 0 : index
    %1 = vector.load %arg2[%c0_1, %c0_2] : memref<32x8xf32, #tpu.memory_space<vmem>>, vector<32x8xf32>
    %cst = arith.constant dense<0.000000e+00> : vector<64x8xf32>
    %2 = tpu.matmul %0, %1, %cst {dimension_numbers = #tpu.dot_dimension_numbers<[1], [0], [0], [1], [0, 0, 1, 1], [], []>} : vector<64x32xf32>, vector<32x8xf32>, vector<64x8xf32> -> vector<64x8xf32>
    %c0_3 = arith.constant 0 : index
    %c0_4 = arith.constant 0 : index
    %3 = vector.load %arg3[%c0_3, %c0_4] : memref<1x8xf32, #tpu.memory_space<vmem>>, vector<1x8xf32>
    %4 = vector.broadcast %3 : vector<1x8xf32> to vector<64x8xf32>
    %5 = arith.addf %2, %4 : vector<64x8xf32>
    %cst_5 = arith.constant dense<0xFF800000> : vector<64xf32>
    %6 = vector.multi_reduction <maximumf>, %5, %cst_5 [1] : vector<64x8xf32> to vector<64xf32>
    %7 = vector.shape_cast %6 : vector<64xf32> to vector<64x1xf32>
    %8 = vector.broadcast %7 : vector<64x1xf32> to vector<64x8xf32>
    %9 = arith.subf %5, %8 : vector<64x8xf32>
    %10 = math.exp %9 : vector<64x8xf32>
    %cst_6 = arith.constant dense<0.000000e+00> : vector<64xf32>
    %11 = vector.multi_reduction <add>, %10, %cst_6 [1] : vector<64x8xf32> to vector<64xf32>
    %12 = vector.shape_cast %11 : vector<64xf32> to vector<64x1xf32>
    %13 = math.log %12 : vector<64x1xf32>
    %14 = vector.broadcast %13 : vector<64x1xf32> to vector<64x8xf32>
    %15 = arith.subf %9, %14 : vector<64x8xf32>
    %c0_7 = arith.constant 0 : index
    %c0_8 = arith.constant 0 : index
    %16 = vector.load %arg4[%c0_7, %c0_8] : memref<64x8xf32, #tpu.memory_space<vmem>>, vector<64x8xf32>
    tpu.vector_store %arg4[%c0_7, %c0_8], %15 {strides = array<i32>} : memref<64x8xf32, #tpu.memory_space<vmem>>, vector<64x8xf32>,
    return
  }
  func.func @transform_0(%arg0: i32) -> (i32, i32) {
    %c0_i32 = arith.constant 0 : i32
    %c0_i32_0 = arith.constant 0 : i32
    return %arg0, %c0_i32 : i32, i32
  }
  func.func @transform_1(%arg0: i32) -> (i32, i32) {
    %c0_i32 = arith.constant 0 : i32
    %c0_i32_0 = arith.constant 0 : i32
    %c0_i32_1 = arith.constant 0 : i32
    return %c0_i32, %c0_i32_0 : i32, i32
  }
  func.func @transform_2(%arg0: i32) -> (i32, i32) {
    %c0_i32 = arith.constant 0 : i32
    %c0_i32_0 = arith.constant 0 : i32
    %c0_i32_1 = arith.constant 0 : i32
    return %c0_i32, %c0_i32_0 : i32, i32
  }
  func.func @transform_3(%arg0: i32) -> (i32, i32) {
    %c0_i32 = arith.constant 0 : i32
    %c0_i32_0 = arith.constant 0 : i32
    return %arg0, %c0_i32 : i32, i32
  }
}

</mosaic_0001>

<llo_original>
// kernel: tpu_custom_call.1
$region0: #{tpu_custom_call.1}
  #allocation0 [shape = 'u32[]', space=smem, size = 0x4, offset = 0x4, fixed_abs, tag = 'smem constant byte address 0x4 - core index']
  #allocation1 [shape = 'u32[144,128]{1,0:T(1,128)}', space=vmem, size = 0x12000, scoped, tag = 'internal scratch']
  %s0 = inlined_call_operand.vmem [shape: f32[64,32], index: 0, kind: input, shape index: {}]
  %s1 = inlined_call_operand.vmem [shape: f32[32,8], index: 1, kind: input, shape index: {}]
  %s2 = inlined_call_operand.vmem [shape: f32[1,8], index: 2, kind: input, shape index: {}]
  %s3 = inlined_call_operand.vmem [shape: f32[64,8], index: 3, kind: output, shape index: {}]
  %s4 = sld [smem:[#allocation0]]
  $region22: #{tpu_custom_call.1} parent=0
    _
  %s6 = ssub.s32 1, %s4
  %s7 = scalar_select 0, %s6, %s4
  // Predicated region
  $region2: #{tpu_custom_call.1} parent=0 // pred_check
    _
  $region3: #{tpu_custom_call.1} parent=0 // pred_check_branch
    %9 = sbr.rel (0) target = $region5
  $region4: #{tpu_custom_call.1} parent=0 // pred_region
    _
  $region5: #{tpu_custom_call.1} parent=0 // pred_fallthru
    _
  // Predicated region
  $region6: #{tpu_custom_call.1} parent=0 // pred_check
    _
  $region7: #{tpu_custom_call.1} parent=0 // pred_check_branch
    %11 = sbr.rel (0) target = $region9
  $region8: #{tpu_custom_call.1} parent=0 // pred_region
    _
  $region9: #{tpu_custom_call.1} parent=0 // pred_fallthru
    _
  // Predicated region
  $region10: #{tpu_custom_call.1} parent=0 // pred_check
    _
  $region11: #{tpu_custom_call.1} parent=0 // pred_check_branch
    %13 = sbr.rel (0) target = $region13
  $region12: #{tpu_custom_call.1} parent=0 // pred_region
    _
  $region13: #{tpu_custom_call.1} parent=0 // pred_fallthru
    _
  %v14 = vld [vmem:[%s0] sm:$0xff]
  %v15 = vld [vmem:[%s0 + $0x8] sm:$0xff]
  %v16 = vld [vmem:[%s0 + $0x10] sm:$0xff]
  %v17 = vld [vmem:[%s0 + $0x18] sm:$0xff]
  %v18 = vld [vmem:[%s0 + $0x20] sm:$0xff]
  %v19 = vld [vmem:[%s0 + $0x28] sm:$0xff]
  %v20 = vld [vmem:[%s0 + $0x30] sm:$0xff]
  %v21 = vld [vmem:[%s0 + $0x38] sm:$0xff]
  %v22 = vld [vmem:[%s1] sm:$0xff]
  %v23 = vld [vmem:[%s1 + $0x8] sm:$0xff]
  %v24 = vld [vmem:[%s1 + $0x10] sm:$0xff]
  %v25 = vld [vmem:[%s1 + $0x18] sm:$0xff]
  %v26 = vld [vmem:[%s2] sm:$0x1]
  %v28 = vlaneseq
  %v29 = vshrl.u32 %v28, 7
  %v30 = vsub.s32 0, %v29
  %v31 = vrot.slane %v26, %v30
  %vm33 = vcmask 261120
  %v35 = vsel %vm33, %v14, 0
  %v38 = vsel %vm33, %v15, 0
  %v41 = vsel %vm33, %v16, 0
  %v44 = vsel %vm33, %v17, 0
  %v47 = vsel %vm33, %v18, 0
  %v50 = vsel %vm33, %v19, 0
  %v53 = vsel %vm33, %v20, 0
  %v56 = vsel %vm33, %v21, 0
  %58 = vmatprep.subr.mxu0 0.0
  %59 = vmatpush1.msra.mxu0 %v22
  %60 = vmatprep.subr.mxu0 0.0
  %61 = vmatpush1.msra.mxu0 %v23
  %62 = vmatprep.subr.mxu0 0.0
  %63 = vmatpush1.msra.mxu0 %v24
  %64 = vmatprep.subr.mxu0 0.0
  %65 = vmatpush1.msra.mxu0 %v25
  %66 = vmatprep.subr.mxu0 0.0
  %67 = vmatpush1.msra.mxu0 0.0
  %68 = vmatprep.subr.mxu0 0.0
  %69 = vmatpush1.msra.mxu0 0.0
  %70 = vmatprep.subr.mxu0 0.0
  %71 = vmatpush1.msra.mxu0 0.0
  %72 = vmatprep.subr.mxu0 0.0
  %73 = vmatpush1.msra.mxu0 0.0
  %74 = vmatprep.subr.mxu0 0.0
  %75 = vmatpush1.msra.mxu0 0.0
  %76 = vmatprep.subr.mxu0 0.0
  %77 = vmatpush1.msra.mxu0 0.0
  %78 = vmatprep.subr.mxu0 0.0
  %79 = vmatpush1.msra.mxu0 0.0
  %80 = vmatprep.subr.mxu0 0.0
  %81 = vmatpush1.msra.mxu0 0.0
  %82 = vmatprep.subr.mxu0 0.0
  %83 = vmatpush1.msra.mxu0 0.0
  %84 = vmatprep.subr.mxu0 0.0
  %85 = vmatpush1.msra.mxu0 0.0
  %86 = vmatprep.subr.mxu0 0.0
  %87 = vmatpush1.msra.mxu0 0.0
  %88 = vmatprep.subr.mxu0 0.0
  %89 = vmatpush1.msra.mxu0 0.0
  %90 = vmatprep.subr.mxu0 0.0
  %91 = vmatpush1.msra.mxu0 0.0
  %92 = vmatprep.subr.mxu0 0.0
  %93 = vmatpush1.msra.mxu0 0.0
  %94 = vmatprep.subr.mxu0 0.0
  %95 = vmatpush1.msra.mxu0 0.0
  %96 = vmatprep.subr.mxu0 0.0
  %97 = vmatpush1.msra.mxu0 0.0
  %98 = vmatprep.subr.mxu0 0.0
  %99 = vmatpush1.msra.mxu0 0.0
  %100 = vmatprep.subr.mxu0 0.0
  %101 = vmatpush1.msra.mxu0 0.0
  %102 = vmatprep.subr.mxu0 0.0
  %103 = vmatpush1.msra.mxu0 0.0
  %104 = vmatprep.subr.mxu0 0.0
  %105 = vmatpush1.msra.mxu0 0.0
  %106 = vmatprep.subr.mxu0 0.0
  %107 = vmatpush1.msra.mxu0 0.0
  %108 = vmatprep.subr.mxu0 0.0
  %109 = vmatpush1.msra.mxu0 0.0
  %110 = vmatprep.subr.mxu0 0.0
  %111 = vmatpush1.msra.mxu0 0.0
  %112 = vmatprep.subr.mxu0 0.0
  %113 = vmatpush1.msra.mxu0 0.0
  %114 = vmatprep.subr.mxu0 0.0
  %115 = vmatpush1.msra.mxu0 0.0
  %116 = vmatprep.subr.mxu0 0.0
  %117 = vmatpush1.msra.mxu0 0.0
  %118 = vmatprep.subr.mxu0 0.0
  %119 = vmatpush1.msra.mxu0 0.0
  %120 = vmatprep.subr.mxu0 0.0
  %121 = vmatpush1.msra.mxu0 0.0
  %122 = vmatprep.mubr.f32.mxu0 0.0
  %123 = vmatmul.mubr.f32.gmra.mrb[0].mxu0 %v35
  %v124 = vpop.f32.mrb[0].mxu0
  %v125 = vadd.f32 %v31, %v124
  %v126 = vpop.f32.mrb[0].mxu0
  %127 = vmatprep.mubr.f32.mxu0 0.0
  %128 = vmatmul.mubr.f32.gmra.mrb[0].mxu0 %v38
  %v129 = vpop.f32.mrb[0].mxu0
  %v130 = vadd.f32 %v31, %v129
  %v131 = vpop.f32.mrb[0].mxu0
  %132 = vmatprep.mubr.f32.mxu0 0.0
  %133 = vmatmul.mubr.f32.gmra.mrb[0].mxu0 %v41
  %v134 = vpop.f32.mrb[0].mxu0
  %v135 = vadd.f32 %v31, %v134
  %v136 = vpop.f32.mrb[0].mxu0
  %137 = vmatprep.mubr.f32.mxu0 0.0
  %138 = vmatmul.mubr.f32.gmra.mrb[0].mxu0 %v44
  %v139 = vpop.f32.mrb[0].mxu0
  %v140 = vadd.f32 %v31, %v139
  %v141 = vpop.f32.mrb[0].mxu0
  %142 = vmatprep.mubr.f32.mxu0 0.0
  %143 = vmatmul.mubr.f32.gmra.mrb[0].mxu0 %v47
  %v144 = vpop.f32.mrb[0].mxu0
  %v145 = vadd.f32 %v31, %v144
  %v146 = vpop.f32.mrb[0].mxu0
  %147 = vmatprep.mubr.f32.mxu0 0.0
  %148 = vmatmul.mubr.f32.gmra.mrb[0].mxu0 %v50
  %v149 = vpop.f32.mrb[0].mxu0
  %v150 = vadd.f32 %v31, %v149
  %v151 = vpop.f32.mrb[0].mxu0
  %152 = vmatprep.mubr.f32.mxu0 0.0
  %153 = vmatmul.mubr.f32.gmra.mrb[0].mxu0 %v53
  %v154 = vpop.f32.mrb[0].mxu0
  %v155 = vadd.f32 %v31, %v154
  %v156 = vpop.f32.mrb[0].mxu0
  %157 = vmatprep.mubr.f32.mxu0 0.0
  %158 = vmatmul.mubr.f32.gmra.mrb[0].mxu0 %v56
  %v159 = vpop.f32.mrb[0].mxu0
  %v160 = vadd.f32 %v31, %v159
  %v161 = vpop.f32.mrb[0].mxu0
  %162 = vdwg.mxu0
  %vm163 = vcmask 64512
  %v164 = vsel %vm163, %v125, -inf
  %165 = vmax.xlane.f32.xlu0 %v164
  %v166 = vpop.xlane.xlu0 %165
  %v167 = vsel %vm163, %v130, -inf
  %168 = vmax.xlane.f32.xlu0 %v167
  %v169 = vpop.xlane.xlu0 %168
  %v170 = vsel %vm163, %v135, -inf
  %171 = vmax.xlane.f32.xlu0 %v170
  %v172 = vpop.xlane.xlu0 %171
  %v173 = vsel %vm163, %v140, -inf
  %174 = vmax.xlane.f32.xlu0 %v173
  %v175 = vpop.xlane.xlu0 %174
  %v176 = vsel %vm163, %v145, -inf
  %177 = vmax.xlane.f32.xlu0 %v176
  %v178 = vpop.xlane.xlu0 %177
  %v179 = vsel %vm163, %v150, -inf
  %180 = vmax.xlane.f32.xlu0 %v179
  %v181 = vpop.xlane.xlu0 %180
  %v182 = vsel %vm163, %v155, -inf
  %183 = vmax.xlane.f32.xlu0 %v182
  %v184 = vpop.xlane.xlu0 %183
  %v185 = vsel %vm163, %v160, -inf
  %186 = vmax.xlane.f32.xlu0 %v185
  %v187 = vpop.xlane.xlu0 %186
  %v188 = vsub.f32 %v125, %v166
  %v189 = vsub.f32 %v130, %v169
  %v190 = vsub.f32 %v135, %v172
  %v191 = vsub.f32 %v140, %v175
  %v192 = vsub.f32 %v145, %v178
  %v193 = vsub.f32 %v150, %v181
  %v194 = vsub.f32 %v155, %v184
  %v195 = vsub.f32 %v160, %v187
  %v196 = vmul.f32 %v188, 1.442695
  %v197 = vpow.pop %v196
  %v198 = vmul.f32 %v189, 1.442695
  %v199 = vpow.pop %v198
  %v200 = vmul.f32 %v190, 1.442695
  %v201 = vpow.pop %v200
  %v202 = vmul.f32 %v191, 1.442695
  %v203 = vpow.pop %v202
  %v204 = vmul.f32 %v192, 1.442695
  %v205 = vpow.pop %v204
  %v206 = vmul.f32 %v193, 1.442695
  %v207 = vpow.pop %v206
  %v208 = vmul.f32 %v194, 1.442695
  %v209 = vpow.pop %v208
  %v210 = vmul.f32 %v195, 1.442695
  %v211 = vpow.pop %v210
  %v212 = vsel %vm163, %v197, 0.0
  %213 = vadd.xlane.f32.xlu0 %v212
  %v214 = vpop.xlane.xlu0 %213
  %v215 = vsel %vm163, %v199, 0.0
  %216 = vadd.xlane.f32.xlu0 %v215
  %v217 = vpop.xlane.xlu0 %216
  %v218 = vsel %vm163, %v201, 0.0
  %219 = vadd.xlane.f32.xlu0 %v218
  %v220 = vpop.xlane.xlu0 %219
  %v221 = vsel %vm163, %v203, 0.0
  %222 = vadd.xlane.f32.xlu0 %v221
  %v223 = vpop.xlane.xlu0 %222
  %v224 = vsel %vm163, %v205, 0.0
  %225 = vadd.xlane.f32.xlu0 %v224
  %v226 = vpop.xlane.xlu0 %225
  %v227 = vsel %vm163, %v207, 0.0
  %228 = vadd.xlane.f32.xlu0 %v227
  %v229 = vpop.xlane.xlu0 %228
  %v230 = vsel %vm163, %v209, 0.0
  %231 = vadd.xlane.f32.xlu0 %v230
  %v232 = vpop.xlane.xlu0 %231
  %v233 = vsel %vm163, %v211, 0.0
  %234 = vadd.xlane.f32.xlu0 %v233
  %v235 = vpop.xlane.xlu0 %234
  %v236 = vlog2.pop %v214
  %v237 = vmul.f32 %v236, 0.6931472
  %v238 = vlog2.pop %v217
  %v239 = vmul.f32 %v238, 0.6931472
  %v240 = vlog2.pop %v220
  %v241 = vmul.f32 %v240, 0.6931472
  %v242 = vlog2.pop %v223
  %v243 = vmul.f32 %v242, 0.6931472
  %v244 = vlog2.pop %v226
  %v245 = vmul.f32 %v244, 0.6931472
  %v246 = vlog2.pop %v229
  %v247 = vmul.f32 %v246, 0.6931472
  %v248 = vlog2.pop %v232
  %v249 = vmul.f32 %v248, 0.6931472
  %v250 = vlog2.pop %v235
  %v251 = vmul.f32 %v250, 0.6931472
  %v252 = vsub.f32 %v188, %v237
  %v253 = vsub.f32 %v189, %v239
  %v254 = vsub.f32 %v190, %v241
  %v255 = vsub.f32 %v191, %v243
  %v256 = vsub.f32 %v192, %v245
  %v257 = vsub.f32 %v193, %v247
  %v258 = vsub.f32 %v194, %v249
  %v259 = vsub.f32 %v195, %v251
  %260 = vst.msk [vmem:[%s3] sm:$0xff] %vm163, %v252
  %261 = vst.msk [vmem:[%s3 + $0x8] sm:$0xff] %vm163, %v253
  %262 = vst.msk [vmem:[%s3 + $0x10] sm:$0xff] %vm163, %v254
  %263 = vst.msk [vmem:[%s3 + $0x18] sm:$0xff] %vm163, %v255
  %264 = vst.msk [vmem:[%s3 + $0x20] sm:$0xff] %vm163, %v256
  %265 = vst.msk [vmem:[%s3 + $0x28] sm:$0xff] %vm163, %v257
  %266 = vst.msk [vmem:[%s3 + $0x30] sm:$0xff] %vm163, %v258
  %267 = vst.msk [vmem:[%s3 + $0x38] sm:$0xff] %vm163, %v259
  // Predicated region
  $region14: #{tpu_custom_call.1} parent=0 // pred_check
    _
  $region15: #{tpu_custom_call.1} parent=0 // pred_check_branch
    %269 = sbr.rel (0) target = $region17
  $region16: #{tpu_custom_call.1} parent=0 // pred_region
    _
  $region17: #{tpu_custom_call.1} parent=0 // pred_fallthru
    _
  // Predicated region
  $region18: #{tpu_custom_call.1} parent=0 // pred_check
    _
  $region19: #{tpu_custom_call.1} parent=0 // pred_check_branch
    %271 = sbr.rel (0) target = $region21
  $region20: #{tpu_custom_call.1} parent=0 // pred_region
    _
  $region21: #{tpu_custom_call.1} parent=0 // pred_fallthru
    _

</llo_original>
